<compile_context>
chip_gen: v7x
topology: tpu7x:2x2x1
jax: 0.10.0
libtpu: 0.0.40
codegen_flags: <defaults>
</compile_context>

<pallas_src>
import math

import jax
import jax.numpy as jnp
from jax.experimental import pallas as pl
from jax.experimental.pallas import tpu as pltpu


def _sme_kernel(row_ref, o_ref):
    # row_ref: (1, L)   pre-projected mechanism embeddings, already in out dtype
    # o_ref  : (bt, L)  output tile: bt rows, each row = g batch elements
    o_ref[...] = jnp.broadcast_to(row_ref[...], o_ref.shape).astype(o_ref.dtype)


def scattering_mechanism_embedding(x, embeddings, weight, bias,
                                   *, tile_bytes=8 * 1024 * 1024):
    """Pallas forward pass.

    Args:
      x:          (B, C, H, W) -- only B is used (matches PyTorch forward).
      embeddings: (1, num_mechanisms, dim)
      weight:     (dim, dim)  PyTorch Linear weight (out_features, in_features)
      bias:       (dim,)      PyTorch Linear bias
    Returns:
      (B, num_mechanisms, dim)
    """
    B = x.shape[0]
    _, n, d = embeddings.shape
    nd = n * d
    out_dtype = embeddings.dtype
    itemsize = jnp.dtype(out_dtype).itemsize

    # Batch-invariant projection, computed once in f32 (matches PyTorch Linear).
    row_nd = (embeddings.reshape(n, d).astype(jnp.float32)
              @ weight.astype(jnp.float32).T
              + bias.astype(jnp.float32))                      # (n, d) f32
    row_out = row_nd.astype(out_dtype)                         # (n, d) out dtype

    # Group factor: smallest g with (g * nd) % 128 == 0 -> lane-dense rows.
    g = 128 // math.gcd(nd, 128)
    B_main = (B // g) * g          # bulk handled by the kernel (lane-dense)
    B_rem = B - B_main             # < g leftover rows handled in the wrapper
    rows = B_main // g
    L = g * nd

    pieces = []

    if rows > 0:
        row_big = jnp.tile(row_out.reshape(1, nd), (1, g))     # (1, L)

        # Sublane packing multiple: 8 rows/vreg-tile for f32, 16 bf16, 32 int8.
        sub = 8 * max(1, 4 // itemsize)

        bytes_per_row = L * itemsize
        bt_cap = max(sub, (tile_bytes // bytes_per_row) // sub * sub)
        # Guarantee >=2 grid steps when enough rows exist, so the "parallel"
        # axis can shard across v7x's two TensorCores (harmless on v5e/v6e).
        if rows >= 2 * sub:
            half = ((pl.cdiv(rows, 2) + sub - 1) // sub) * sub
            bt_cap = min(bt_cap, half)
        bt = min(rows, bt_cap)
        grid = (pl.cdiv(rows, bt),)

        out2d = pl.pallas_call(
            _sme_kernel,
            out_shape=jax.ShapeDtypeStruct((rows, L), out_dtype),
            grid_spec=pltpu.PrefetchScalarGridSpec(
                num_scalar_prefetch=0,
                grid=grid,
                in_specs=[pl.BlockSpec((1, L), lambda i: (0, 0))],
                out_specs=pl.BlockSpec((bt, L), lambda i: (i, 0)),
            ),
            compiler_params=pltpu.CompilerParams(
                dimension_semantics=("parallel",),
                vmem_limit_bytes=32 * 1024 * 1024),
            cost_estimate=pl.CostEstimate(
                flops=0,
                transcendentals=0,
                bytes_accessed=(B_main * nd + L) * itemsize),
        )(row_big)

        # Row-major reshape (rows, g*n*d) -> (B_main, n, d): pure metadata.
        pieces.append(out2d.reshape(B_main, n, d))

    if B_rem > 0:
        # Tiny remainder (< g batch elements): output is batch-invariant, so a
        # wrapper-side broadcast is exact and avoids sub-128-lane masked stores.
        pieces.append(jnp.broadcast_to(row_out, (B_rem, n, d)))

    if len(pieces) == 1:
        return pieces[0]
    return jnp.concatenate(pieces, axis=0)


if __name__ == "__main__":
    dim = 32
    num_mechanisms = 3
    C, H, W = 4, 16, 16

    key = jax.random.PRNGKey(0)
    k_x, k_emb, k_w, k_b = jax.random.split(key, 4)

    # Deterministic in-script parameter init (shapes from __init__).
    embeddings = jax.random.normal(k_emb, (1, num_mechanisms, dim), dtype=jnp.float32)
    weight = jax.random.normal(k_w, (dim, dim), dtype=jnp.float32) * (1.0 / jnp.sqrt(dim))
    bias = jax.random.normal(k_b, (dim,), dtype=jnp.float32) * 0.01

    # Pure-JAX reference: emb @ W.T + b, broadcast over batch.
    ref_nd = embeddings.reshape(num_mechanisms, dim) @ weight.T + bias

    # B=8 : pure lane-dense kernel path (g=4 -> rows=2, 384-lane rows)
    # B=10: kernel path for 8 elements + wrapper remainder for 2
    # B=2 : pure wrapper-remainder path (B < g)
    for B in (8, 10, 2):
        x = jax.random.normal(k_x, (B, C, H, W), dtype=jnp.float32)
        out = scattering_mechanism_embedding(x, embeddings, weight, bias)
        out = jax.block_until_ready(out)
        ref = jnp.broadcast_to(ref_nd, (B, num_mechanisms, dim))
        assert out.shape == (B, num_mechanisms, dim)
        assert jnp.allclose(out, ref, atol=1e-5, rtol=1e-5)

    print("KERNEL_OK")
</pallas_src>

<mosaic_0001>
module attributes {stable_mosaic.version = 11 : i64} {
  func.func @_sme_kernel(%arg0: i32, %arg1: memref<1x384xf32, #tpu.memory_space<vmem>>, %arg2: memref<2x384xf32, #tpu.memory_space<vmem>>) attributes {dimension_semantics = [#tpu.dimension_semantics<parallel>], iteration_bounds = array<i64: 1>, scalar_prefetch = 0 : i64, scratch_operands = 0 : i64, tpu.core_type = #tpu.core_type<tc>, window_params = [{pipeline_mode = #tpu.pipeline_mode<synchronous>, transform_indices = @transform_0, window_bounds = array<i64: 1, 384>}, {transform_indices = @transform_1, window_bounds = array<i64: 2, 384>}]} {
    %c0 = arith.constant 0 : index
    %c0_0 = arith.constant 0 : index
    %0 = vector.load %arg1[%c0, %c0_0] : memref<1x384xf32, #tpu.memory_space<vmem>>, vector<1x384xf32>
    %1 = vector.shape_cast %0 : vector<1x384xf32> to vector<1x384xf32>
    %2 = vector.broadcast %1 : vector<1x384xf32> to vector<2x384xf32>
    %c0_1 = arith.constant 0 : index
    %c0_2 = arith.constant 0 : index
    %3 = vector.load %arg2[%c0_1, %c0_2] : memref<2x384xf32, #tpu.memory_space<vmem>>, vector<2x384xf32>
    tpu.vector_store %arg2[%c0_1, %c0_2], %2 {strides = array<i32>} : memref<2x384xf32, #tpu.memory_space<vmem>>, vector<2x384xf32>,
    return
  }
  func.func @transform_0(%arg0: i32) -> (i32, i32) {
    %c0_i32 = arith.constant 0 : i32
    %c0_i32_0 = arith.constant 0 : i32
    %c0_i32_1 = arith.constant 0 : i32
    return %c0_i32, %c0_i32_0 : i32, i32
  }
  func.func @transform_1(%arg0: i32) -> (i32, i32) {
    %c0_i32 = arith.constant 0 : i32
    %c0_i32_0 = arith.constant 0 : i32
    return %arg0, %c0_i32 : i32, i32
  }
}

</mosaic_0001>

<llo_original>
// kernel: tpu_custom_call.1
$region0: #{tpu_custom_call.1}
  #allocation0 [shape = 'u32[]', space=smem, size = 0x4, offset = 0x4, fixed_abs, tag = 'smem constant byte address 0x4 - core index']
  #allocation1 [shape = 'u32[144,128]{1,0:T(1,128)}', space=vmem, size = 0x12000, scoped, tag = 'internal scratch']
  %s0 = inlined_call_operand.hbm [shape: f32[1,384], index: 0, kind: input, shape index: {}]
  %s1 = inlined_call_operand.hbm [shape: f32[2,384], index: 1, kind: output, shape index: {}]
  %s2 = sld [smem:[#allocation0]]
  $region18: #{tpu_custom_call.1} parent=0
    _
  %s4 = ssub.s32 1, %s2
  %s5 = scalar_select 0, %s4, %s2
  $region1: #{tpu_custom_call.1} parent=0
    #allocation2 [shape = 'u8[1536]{0}', space=vmem, size = 0x800, scoped, tag = 'input window, operand 0, single buffered']
    #allocation3 [shape = 's32[1]{0}', space=sflag, size = 0x4, scoped, tag = 'scoped memory for tpu_custom_call.1']
    #allocation4 [shape = 's32[1]{0}', space=sflag, size = 0x4, scoped, tag = 'scoped memory for tpu_custom_call.1']
    #allocation5 [shape = 'u8[3072]{0}', space=vmem, size = 0xc00, scoped, tag = 'output window, operand 0, single buffered']
    %6 = vsyncpa [#allocation3], 0
    %7 = vsyncpa [#allocation4], 0
    // Predicated region
    $region2: #{tpu_custom_call.1} parent=1 // pred_check
      _
    $region3: #{tpu_custom_call.1} parent=1 // pred_check_branch
      %9 = sbr.rel (0) target = $region5
    $region4: #{tpu_custom_call.1} parent=1 // pred_region
      %s11 = ssub.s32 48, 48
      %12 = vsyncadd [#allocation3], %s11
      %s14 = sshll.u32 [#allocation2], 4
      %s15 = int_to_ptr.vmem [resolvable:$true] %s14
      %17 = dma.hbm_to_vmem [thread:$0]  %s0, 48, %s15, [#allocation3]
    $region5: #{tpu_custom_call.1} parent=1 // pred_fallthru
      _
    // Predicated region
    $region6: #{tpu_custom_call.1} parent=1 // pred_check
      _
    $region7: #{tpu_custom_call.1} parent=1 // pred_check_branch
      %19 = sbr.rel (0) target = $region9
    $region8: #{tpu_custom_call.1} parent=1 // pred_region
      %20 = dma.done [#allocation3], 48
    $region9: #{tpu_custom_call.1} parent=1 // pred_fallthru
      _
    %v21 = vld [vmem:[#allocation2] sm:$0x7]
    %v23 = vlaneseq
    %v24 = vshrl.u32 %v23, 7
    %v25 = vsub.s32 0, %v24
    %v26 = vrot.slane %v21, %v25
    %v27 = vlaneseq
    %v28 = vshrl.u32 %v27, 7
    %v29 = vsub.s32 1, %v28
    %v30 = vrot.slane %v21, %v29
    %v31 = vlaneseq
    %v32 = vshrl.u32 %v31, 7
    %v33 = vsub.s32 2, %v32
    %v34 = vrot.slane %v21, %v33
    %v35 = vcombine.low %v26, %v30
    %v37 = vunpack.c.l.s4 1983009808
    %v38 = vunpack.c.0.s8 %v37
    %v39 = vlaneseq
    %v40 = vshrl.u32 %v39, 7
    %v41 = vsub.s32 %v38, %v40
    %v42 = vrot.slane %v35, %v41
    %v44 = vunpack.c.l.s4 1983009808
    %v45 = vunpack.c.0.s8 %v44
    %v46 = vlaneseq
    %v47 = vshrl.u32 %v46, 7
    %v48 = vsub.s32 %v45, %v47
    %v49 = vrot.slane %v34, %v48
    %v50 = vcombine.low %v42, %v49
    %52 = vst [vmem:[#allocation5] sm:$0x3f] %v50
    // Predicated region
    $region10: #{tpu_custom_call.1} parent=1 // pred_check
      _
    $region11: #{tpu_custom_call.1} parent=1 // pred_check_branch
      %54 = sbr.rel (0) target = $region13
    $region12: #{tpu_custom_call.1} parent=1 // pred_region
      %s56 = ssub.s32 96, 96
      %57 = vsyncadd [#allocation4], %s56
      %s59 = sshll.u32 [#allocation5], 4
      %s60 = int_to_ptr.vmem [resolvable:$true] %s59
      %62 = dma.vmem_to_hbm [thread:$0]  %s60, 96, %s1, [#allocation4]
    $region13: #{tpu_custom_call.1} parent=1 // pred_fallthru
      _
    // Predicated region
    $region14: #{tpu_custom_call.1} parent=1 // pred_check
      _
    $region15: #{tpu_custom_call.1} parent=1 // pred_check_branch
      %64 = sbr.rel (0) target = $region17
    $region16: #{tpu_custom_call.1} parent=1 // pred_region
      %65 = dma.done [#allocation4], 96
    $region17: #{tpu_custom_call.1} parent=1 // pred_fallthru
      _
    %66 = vsyncpa [#allocation3], 1
    %67 = vsyncpa [#allocation4], 1

</llo_original>
